<compile_context>
chip_gen: v7x
topology: tpu7x:2x2x1
jax: 0.10.0
libtpu: 0.0.40
codegen_flags: <defaults>
</compile_context>

<pallas_src>
import jax
import jax.numpy as jnp
from jax.experimental import pallas as pl
from jax.experimental.pallas import tpu as pltpu


def _series_decomp_kernel(w_ref, x_ref, res_ref, mean_ref):
    """w_ref: (L, L) f32 (resident).  x_ref / res_ref / mean_ref: (bt, L, ct)."""
    w = w_ref[...]
    bt = x_ref.shape[0]
    for b in range(bt):                       # static unroll; bt is kept <= 8
        xb = x_ref[b]                         # (L, ct), input dtype
        mean_f32 = jnp.dot(w, xb.astype(jnp.float32),
                           preferred_element_type=jnp.float32)
        mean = mean_f32.astype(mean_ref.dtype)
        mean_ref[b] = mean
        # Residual in the input dtype: torch subtracts the already-rounded
        # avg_pool output; also avoids an extra f32 copy of x.
        res_ref[b] = (xb - mean.astype(xb.dtype)).astype(res_ref.dtype)


def _avgpool_weights(L, kernel_size):
    """(L, L) f32 W with  mean[t] = sum_j W[t, j] * x[j]  equal to the
    replication-padded AvgPool1d(kernel_size, stride=1) at position t."""
    pad = (kernel_size - 1) // 2
    t = jnp.arange(L, dtype=jnp.int32)[:, None]
    j = jnp.arange(L, dtype=jnp.int32)[None, :]
    w = ((j >= t - pad) & (j <= t + pad)).astype(jnp.float32)
    # Window taps that fall before index 0 / after index L-1 hit the replicated
    # first / last row: fold those counts into columns 0 and L-1.
    low = jnp.clip(pad - t[:, 0], 0, kernel_size).astype(jnp.float32)
    high = jnp.clip(t[:, 0] + pad - (L - 1), 0, kernel_size).astype(jnp.float32)
    w = w.at[:, 0].add(low)
    w = w.at[:, L - 1].add(high)
    return w / float(kernel_size)


def _vmem_limit_bytes():
    try:
        cap = int(pltpu.get_tpu_info().vmem_capacity_bytes)
    except Exception:
        cap = 64 * 1024 * 1024            # conservative (v7x per-core VMEM)
    return max(32 * 1024 * 1024, min(int(cap * 0.75), 96 * 1024 * 1024))


def _pick_tiles(B, L, C, itemsize, vmem_limit):
    """Batch / channel tile sizes from an honest per-step VMEM estimate."""
    # Channel tile: full C when modest, else multiples of 128 (lane-aligned).
    ct = C if C <= 512 else 512
    budget = vmem_limit // 2                      # headroom for Mosaic scratch
    w_bytes = 2 * L * L * 4                       # resident weight (alloc x2)
    per_b = L * ct * (3 * 2 * itemsize + 2 * 4)   # in+res+mean double-buffered
                                                  # + f32 temporaries in-kernel
    avail = max(budget - w_bytes, per_b)
    bt = int(max(1, min(B, avail // per_b, 8)))   # <=8: kernel unrolls over bt
    # Prefer >=2 grid steps (pipelining + megacore) when the problem allows it.
    if pl.cdiv(B, bt) * pl.cdiv(C, ct) < 2:
        if B > 1:
            bt = (B + 1) // 2
        elif C >= 256:
            ct = 128 * max(1, (C // 128) // 2)
    return bt, ct


def series_decomp(x, kernel_size):
    """x: (B, L, C) -> (res, moving_mean), both (B, L, C).  stride=1, odd k."""
    assert kernel_size >= 1 and kernel_size % 2 == 1, (
        "series_decomp uses stride=1 with an odd kernel_size")
    B, L, C = x.shape
    itemsize = jnp.dtype(x.dtype).itemsize
    vmem_limit = _vmem_limit_bytes()
    bt, ct = _pick_tiles(B, L, C, itemsize, vmem_limit)
    grid = (pl.cdiv(B, bt), pl.cdiv(C, ct))

    w = _avgpool_weights(L, kernel_size)

    w_spec = pl.BlockSpec((L, L), lambda i, j: (0, 0))   # same block -> resident
    io_spec = pl.BlockSpec((bt, L, ct), lambda i, j: (i, 0, j))
    out_struct = jax.ShapeDtypeStruct((B, L, C), x.dtype)

    bytes_accessed = 3 * B * L * C * itemsize + L * L * 4   # 1 read + 2 writes + W
    flops = 2 * B * L * L * C + B * L * C                   # matmul + residual

    res, mean = pl.pallas_call(
        _series_decomp_kernel,
        out_shape=(out_struct, out_struct),
        grid_spec=pltpu.PrefetchScalarGridSpec(
            num_scalar_prefetch=0,
            grid=grid,
            in_specs=[w_spec, io_spec],
            out_specs=(io_spec, io_spec),
        ),
        compiler_params=pltpu.CompilerParams(
            dimension_semantics=("parallel", "parallel"),
            vmem_limit_bytes=vmem_limit,
        ),
        cost_estimate=pl.CostEstimate(
            flops=int(flops), transcendentals=0,
            bytes_accessed=int(bytes_accessed)),
    )(w, x)
    return res, mean


def _reference(x, kernel_size):
    pad = (kernel_size - 1) // 2
    xf = x.astype(jnp.float32)
    front = jnp.repeat(xf[:, 0:1, :], pad, axis=1)
    end = jnp.repeat(xf[:, -1:, :], pad, axis=1)
    xp = jnp.concatenate([front, xf, end], axis=1)
    L = x.shape[1]
    mean = jnp.stack(
        [jnp.mean(xp[:, t:t + kernel_size, :], axis=1) for t in range(L)], axis=1)
    mean = mean.astype(x.dtype)
    return (x - mean).astype(x.dtype), mean


if __name__ == "__main__":
    kernel_size = 5

    # f32, small C (not a multiple of 128): full-C block path.
    x = jax.random.normal(jax.random.PRNGKey(0), (2, 16, 32), dtype=jnp.float32)
    res, mean = series_decomp(x, kernel_size)
    jax.block_until_ready((res, mean))
    res_ref, mean_ref = _reference(x, kernel_size)
    assert res.shape == res_ref.shape and mean.shape == mean_ref.shape
    assert jnp.allclose(mean, mean_ref, atol=1e-3, rtol=1e-3), "f32 mean mismatch"
    assert jnp.allclose(res, res_ref, atol=1e-3, rtol=1e-3), "f32 res mismatch"

    # Odd batch -> partial last batch block via the cdiv grid.
    x2 = jax.random.normal(jax.random.PRNGKey(1), (3, 24, 200), dtype=jnp.float32)
    res2, mean2 = series_decomp(x2, kernel_size)
    jax.block_until_ready((res2, mean2))
    res2_ref, mean2_ref = _reference(x2, kernel_size)
    assert jnp.allclose(mean2, mean2_ref, atol=1e-3, rtol=1e-3), "odd-B mean mismatch"
    assert jnp.allclose(res2, res2_ref, atol=1e-3, rtol=1e-3), "odd-B res mismatch"

    # bf16 path (residual computed in the input dtype, like torch).
    x3 = jax.random.normal(jax.random.PRNGKey(2), (2, 16, 32), dtype=jnp.bfloat16)
    res3, mean3 = series_decomp(x3, kernel_size)
    jax.block_until_ready((res3, mean3))
    res3_ref, mean3_ref = _reference(x3, kernel_size)
    assert jnp.allclose(mean3.astype(jnp.float32), mean3_ref.astype(jnp.float32),
                        atol=5e-2, rtol=5e-2), "bf16 mean mismatch"
    assert jnp.allclose(res3.astype(jnp.float32), res3_ref.astype(jnp.float32),
                        atol=5e-2, rtol=5e-2), "bf16 res mismatch"

    print("KERNEL_OK")
</pallas_src>

<mosaic_0001>
module attributes {stable_mosaic.version = 11 : i64} {
  func.func @_series_decomp_kernel(%arg0: i32, %arg1: i32, %arg2: memref<16x16xf32, #tpu.memory_space<vmem>>, %arg3: memref<1x16x32xf32, #tpu.memory_space<vmem>>, %arg4: memref<1x16x32xf32, #tpu.memory_space<vmem>>, %arg5: memref<1x16x32xf32, #tpu.memory_space<vmem>>) attributes {dimension_semantics = [#tpu.dimension_semantics<parallel>, #tpu.dimension_semantics<parallel>], iteration_bounds = array<i64: 2, 1>, scalar_prefetch = 0 : i64, scratch_operands = 0 : i64, tpu.core_type = #tpu.core_type<tc>, window_params = [{pipeline_mode = #tpu.pipeline_mode<synchronous>, transform_indices = @transform_0, window_bounds = array<i64: 16, 16>}, {transform_indices = @transform_1, window_bounds = array<i64: 1, 16, 32>}, {transform_indices = @transform_2, window_bounds = array<i64: 1, 16, 32>}, {transform_indices = @transform_3, window_bounds = array<i64: 1, 16, 32>}]} {
    %c0 = arith.constant 0 : index
    %c0_0 = arith.constant 0 : index
    %0 = vector.load %arg2[%c0, %c0_0] : memref<16x16xf32, #tpu.memory_space<vmem>>, vector<16x16xf32>
    %c0_1 = arith.constant 0 : index
    %c0_2 = arith.constant 0 : index
    %c0_3 = arith.constant 0 : index
    %1 = vector.load %arg3[%c0_1, %c0_2, %c0_3] : memref<1x16x32xf32, #tpu.memory_space<vmem>>, vector<1x16x32xf32>
    %2 = vector.shape_cast %1 : vector<1x16x32xf32> to vector<16x32xf32>
    %cst = arith.constant dense<0.000000e+00> : vector<16x32xf32>
    %3 = tpu.matmul %0, %2, %cst {dimension_numbers = #tpu.dot_dimension_numbers<[1], [0], [0], [1], [0, 0, 1, 1], [], []>} : vector<16x16xf32>, vector<16x32xf32>, vector<16x32xf32> -> vector<16x32xf32>
    %c0_4 = arith.constant 0 : index
    %c0_5 = arith.constant 0 : index
    %c0_6 = arith.constant 0 : index
    %4 = vector.load %arg5[%c0_4, %c0_5, %c0_6] : memref<1x16x32xf32, #tpu.memory_space<vmem>>, vector<1x16x32xf32>
    %5 = vector.shape_cast %4 : vector<1x16x32xf32> to vector<16x32xf32>
    %6 = vector.shape_cast %3 : vector<16x32xf32> to vector<1x16x32xf32>
    tpu.vector_store %arg5[%c0_4, %c0_5, %c0_6], %6 {strides = array<i32>} : memref<1x16x32xf32, #tpu.memory_space<vmem>>, vector<1x16x32xf32>,
    %7 = arith.subf %2, %3 : vector<16x32xf32>
    %c0_7 = arith.constant 0 : index
    %c0_8 = arith.constant 0 : index
    %c0_9 = arith.constant 0 : index
    %8 = vector.load %arg4[%c0_7, %c0_8, %c0_9] : memref<1x16x32xf32, #tpu.memory_space<vmem>>, vector<1x16x32xf32>
    %9 = vector.shape_cast %8 : vector<1x16x32xf32> to vector<16x32xf32>
    %10 = vector.shape_cast %7 : vector<16x32xf32> to vector<1x16x32xf32>
    tpu.vector_store %arg4[%c0_7, %c0_8, %c0_9], %10 {strides = array<i32>} : memref<1x16x32xf32, #tpu.memory_space<vmem>>, vector<1x16x32xf32>,
    return
  }
  func.func @transform_0(%arg0: i32, %arg1: i32) -> (i32, i32) {
    %c0_i32 = arith.constant 0 : i32
    %c0_i32_0 = arith.constant 0 : i32
    %c0_i32_1 = arith.constant 0 : i32
    return %c0_i32, %c0_i32_0 : i32, i32
  }
  func.func @transform_1(%arg0: i32, %arg1: i32) -> (i32, i32, i32) {
    %c0_i32 = arith.constant 0 : i32
    %c0_i32_0 = arith.constant 0 : i32
    return %arg0, %c0_i32, %arg1 : i32, i32, i32
  }
  func.func @transform_2(%arg0: i32, %arg1: i32) -> (i32, i32, i32) {
    %c0_i32 = arith.constant 0 : i32
    %c0_i32_0 = arith.constant 0 : i32
    return %arg0, %c0_i32, %arg1 : i32, i32, i32
  }
  func.func @transform_3(%arg0: i32, %arg1: i32) -> (i32, i32, i32) {
    %c0_i32 = arith.constant 0 : i32
    %c0_i32_0 = arith.constant 0 : i32
    return %arg0, %c0_i32, %arg1 : i32, i32, i32
  }
}

</mosaic_0001>

<llo_original>
// kernel: tpu_custom_call.1
$region0: #{tpu_custom_call.1}
  #allocation0 [shape = 'u32[]', space=smem, size = 0x4, offset = 0x4, fixed_abs, tag = 'smem constant byte address 0x4 - core index']
  #allocation1 [shape = 'u32[144,128]{1,0:T(1,128)}', space=vmem, size = 0x12000, scoped, tag = 'internal scratch']
  %s0 = inlined_call_operand.hbm [shape: f32[16,16], index: 0, kind: input, shape index: {}]
  %s1 = inlined_call_operand.hbm [shape: f32[2,16,32], index: 1, kind: input, shape index: {}]
  %s2 = inlined_call_operand.hbm [shape: f32[2,16,32], index: 2, kind: output, shape index: {0}]
  %s3 = inlined_call_operand.hbm [shape: f32[2,16,32], index: 3, kind: output, shape index: {1}]
  %4 = xla_tuple %s2, %s3
  %s5 = sld [smem:[#allocation0]]
  $region57: #{tpu_custom_call.1} parent=0
    _
  %s7 = ssub.s32 1, %s5
  %s8 = scalar_select 0, %s7, %s5
  $region1: #{tpu_custom_call.1} parent=0
    #allocation2 [shape = 'u8[8192]{0}', space=vmem, size = 0x2000, scoped, tag = 'input window, operand 0, single buffered']
    #allocation3 [shape = 's32[2]{0}', space=sflag, size = 0x8, scoped, tag = 'scoped memory for tpu_custom_call.1']
    #allocation4 [shape = 's32[2]{0}', space=sflag, size = 0x8, scoped, tag = 'scoped memory for tpu_custom_call.1']
    #allocation5 [shape = 'u8[16384]{0}', space=vmem, size = 0x4000, scoped, tag = 'input window, operand 1']
    #allocation6 [shape = 's32[2]{0}', space=sflag, size = 0x8, scoped, tag = 'scoped memory for tpu_custom_call.1']
    #allocation7 [shape = 'u8[16384]{0}', space=vmem, size = 0x4000, scoped, tag = 'output window, operand 0']
    #allocation8 [shape = 'u8[16384]{0}', space=vmem, size = 0x4000, scoped, tag = 'output window, operand 1']
    #allocation9 [shape = 's32[2]{0}', space=sflag, size = 0x8, scoped, tag = 'scoped memory for tpu_custom_call.1']
    %9 = vsyncpa [#allocation3], 0
    %10 = vsyncpa [#allocation6], 0
    %s11 = scalar_lea.sflag [#allocation6], 1
    %12 = vsyncpa %s11, 0
    %13 = vsyncpa [#allocation4], 0
    %s14 = scalar_lea.sflag [#allocation4], 1
    %15 = vsyncpa %s14, 0
    %16 = vsyncpa [#allocation9], 0
    %s17 = scalar_lea.sflag [#allocation9], 1
    %18 = vsyncpa %s17, 0
    loop: start=0, step=1, limit=4
    $region2: #{tpu_custom_call.1} parent=1 // loop_pre_header
      _
    $region3: #{tpu_custom_call.1} parent=1 // loop_header
      %s20 = sphi 0, %s24
      %p21 = scmp.ge.s32.totalorder %s20, 4
      %s27 = sphi 0, %s39
      %s28 = sphi 0, %s35
      %s29 = sphi 0, %s27
      %s30 = sphi 0, %s28
      %s31 = sphi 0, %s29
      %s32 = sphi 0, %s30
      %s40 = sphi 0, %s40
      %s42 = sphi 0, %s40
      %s43 = sphi 0, %s42
      %s57 = sphi 0, %s43
      %s65 = sphi 0, %s67
      %s68 = sphi 0, %s65
      %s69 = sphi 0, %s68
      %s85 = sphi 0, %s69
      %s93 = sphi 0, %s95
      %s96 = sphi 0, %s93
      %s97 = sphi 0, %s96
      %s113 = sphi 0, %s97
      %s121 = sphi 0, %s123
      %s124 = sphi 0, %s121
      %s125 = sphi 0, %s124
      %s141 = sphi 0, %s125
    $region4: #{tpu_custom_call.1} parent=1 // loop_header_branch
      %23 = sbr.rel (%p21) target = $region8
    $region5: #{tpu_custom_call.1} parent=1 // loop_body
      %s25 = ssub.s32 %s20, 1
      %s26 = ssub.s32 %s20, 2
      %s33 = sadd.s32 1, %s28
      %p34 = scmp.ge.s32.totalorder %s33, 1
      %s35 = scalar_select %p34, 0, %s33
      %s36 = sadd.s32 1, %s27
      %s37 = scalar_select %p34, %s36, %s27
      %p38 = scmp.ge.s32.totalorder %s37, 2
      %s39 = scalar_select %p38, 0, %s37
      %s41 = sadd.s32 %s40, 1
      %p44 = scmp.eq.s32.totalorder %s20, 1
      %p45 = scmp.ne.s32.totalorder %s40, %s42
      %p46 = scmp.eq.s32.totalorder %s20, 0
      %p47 = por %p45, %p46
      %p48 = scmp.ne.s32.totalorder %s40, %s42
      %p49 = scmp.eq.s32.totalorder %s25, 1
      %p50 = por %p48, %p49
      %p51 = scmp.ne.s32.totalorder %s42, %s43
      %p52 = scmp.eq.s32.totalorder %s25, 0
      %p53 = por %p51, %p52
      %p54 = scmp.ne.s32.totalorder %s42, %s43
      %p55 = scmp.eq.s32.totalorder %s26, 1
      %p56 = por %p54, %p55
      %p58 = scmp.ne.s32.totalorder %s43, %s57
      %p59 = scmp.eq.s32.totalorder %s26, 0
      %p60 = por %p58, %p59
      %s61 = ssub.s32 %s27, %s39
      %s62 = ssub.s32 %s28, %s35
      %s63 = sor.u32 %s61, %s62
      %p64 = scmp.eq.s32.totalorder %s63, 0
      %s66 = sadd.s32 %s65, 1
      %s67 = scalar_select %p64, %s65, %s66
      %p70 = pneg %p64
      %p71 = scmp.eq.s32.totalorder %s20, 1
      %p72 = por %p70, %p71
      %p73 = scmp.ne.s32.totalorder %s65, %s68
      %p74 = scmp.eq.s32.totalorder %s20, 0
      %p75 = por %p73, %p74
      %p76 = scmp.ne.s32.totalorder %s65, %s68
      %p77 = scmp.eq.s32.totalorder %s25, 1
      %p78 = por %p76, %p77
      %p79 = scmp.ne.s32.totalorder %s68, %s69
      %p80 = scmp.eq.s32.totalorder %s25, 0
      %p81 = por %p79, %p80
      %p82 = scmp.ne.s32.totalorder %s68, %s69
      %p83 = scmp.eq.s32.totalorder %s26, 1
      %p84 = por %p82, %p83
      %p86 = scmp.ne.s32.totalorder %s69, %s85
      %p87 = scmp.eq.s32.totalorder %s26, 0
      %p88 = por %p86, %p87
      %s89 = ssub.s32 %s27, %s39
      %s90 = ssub.s32 %s28, %s35
      %s91 = sor.u32 %s89, %s90
      %p92 = scmp.eq.s32.totalorder %s91, 0
      %s94 = sadd.s32 %s93, 1
      %s95 = scalar_select %p92, %s93, %s94
      %p98 = pneg %p92
      %p99 = scmp.eq.s32.totalorder %s20, 1
      %p100 = por %p98, %p99
      %p101 = scmp.ne.s32.totalorder %s93, %s96
      %p102 = scmp.eq.s32.totalorder %s20, 0
      %p103 = por %p101, %p102
      %p104 = scmp.ne.s32.totalorder %s93, %s96
      %p105 = scmp.eq.s32.totalorder %s25, 1
      %p106 = por %p104, %p105
      %p107 = scmp.ne.s32.totalorder %s96, %s97
      %p108 = scmp.eq.s32.totalorder %s25, 0
      %p109 = por %p107, %p108
      %p110 = scmp.ne.s32.totalorder %s96, %s97
      %p111 = scmp.eq.s32.totalorder %s26, 1
      %p112 = por %p110, %p111
      %p114 = scmp.ne.s32.totalorder %s97, %s113
      %p115 = scmp.eq.s32.totalorder %s26, 0
      %p116 = por %p114, %p115
      %s117 = ssub.s32 %s27, %s39
      %s118 = ssub.s32 %s28, %s35
      %s119 = sor.u32 %s117, %s118
      %p120 = scmp.eq.s32.totalorder %s119, 0
      %s122 = sadd.s32 %s121, 1
      %s123 = scalar_select %p120, %s121, %s122
      %p126 = pneg %p120
      %p127 = scmp.eq.s32.totalorder %s20, 1
      %p128 = por %p126, %p127
      %p129 = scmp.ne.s32.totalorder %s121, %s124
      %p130 = scmp.eq.s32.totalorder %s20, 0
      %p131 = por %p129, %p130
      %p132 = scmp.ne.s32.totalorder %s121, %s124
      %p133 = scmp.eq.s32.totalorder %s25, 1
      %p134 = por %p132, %p133
      %p135 = scmp.ne.s32.totalorder %s124, %s125
      %p136 = scmp.eq.s32.totalorder %s25, 0
      %p137 = por %p135, %p136
      %p138 = scmp.ne.s32.totalorder %s124, %s125
      %p139 = scmp.eq.s32.totalorder %s26, 1
      %p140 = por %p138, %p139
      %p142 = scmp.ne.s32.totalorder %s125, %s141
      %p143 = scmp.eq.s32.totalorder %s26, 0
      %p144 = por %p142, %p143
      %p145 = scmp.le.s32.totalorder 1, %s20
      %p146 = scmp.lt.s32.totalorder %s20, 3
      %p147 = pnand %p145, %p146
      %p148 = pneg %p147
      // Predicated region
      $region9: #{tpu_custom_call.1} parent=5 // pred_check
        _
      $region10: #{tpu_custom_call.1} parent=5 // pred_check_branch
        %150 = sbr.rel (%p147) target = $region12
      $region11: #{tpu_custom_call.1} parent=5 // pred_region
        %s151 = ssub.s32 %s20, 1
        // Predicated region
        $region13: #{tpu_custom_call.1} parent=11 // pred_check
          %p152 = pneg %p53
        $region14: #{tpu_custom_call.1} parent=11 // pred_check_branch
          %154 = sbr.rel (%p152) target = $region16
        $region15: #{tpu_custom_call.1} parent=11 // pred_region
          %s156 = ssub.s32 256, 256
          %157 = vsyncadd [#allocation3], %s156
          %s158 = sshll.u32 [#allocation2], 4
          %s159 = int_to_ptr.vmem [resolvable:$true] %s158
          %164 = dma.hbm_to_vmem [thread:$0]  %s0, 256, %s159, [#allocation3], 128, 128, 8
        $region16: #{tpu_custom_call.1} parent=11 // pred_fallthru
          _
      $region12: #{tpu_custom_call.1} parent=5 // pred_fallthru
        _
      %p165 = scmp.lt.s32.totalorder %s20, 2
      // Predicated region
      $region17: #{tpu_custom_call.1} parent=5 // pred_check
        %p166 = pneg %p165
      $region18: #{tpu_custom_call.1} parent=5 // pred_check_branch
        %168 = sbr.rel (%p166) target = $region20
      $region19: #{tpu_custom_call.1} parent=5 // pred_region
        // Predicated region
        $region21: #{tpu_custom_call.1} parent=19 // pred_check
          %p169 = pneg %p75
        $region22: #{tpu_custom_call.1} parent=19 // pred_check_branch
          %171 = sbr.rel (%p169) target = $region24
        $region23: #{tpu_custom_call.1} parent=19 // pred_region
          %s172 = sand.u32 %s65, 1
          %s173 = scalar_lea.sflag [#allocation6], %s172
          %s174 = sand.u32 %s65, 1
          %s175 = smul.addr %s174, 16
          %s176 = scalar_lea.vmem [#allocation5], %s175
          %s178 = ssub.s32 256, 256
          %179 = vsyncadd %s173, %s178
          %s180 = smul.addr %s27, 2
          %s181 = sadd.s32 %s28, %s180
          %s182 = smul.addr %s181, 128
          %s183 = scalar_lea.hbm %s1, %s182
          %s184 = sshll.u32 %s176, 4
          %s185 = int_to_ptr.vmem [resolvable:$true] %s184
          %190 = dma.hbm_to_vmem [thread:$0]  %s183, 256, %s185, %s173, 128, 128, 8
        $region24: #{tpu_custom_call.1} parent=19 // pred_fallthru
          _
      $region20: #{tpu_custom_call.1} parent=5 // pred_fallthru
        _
      %p191 = scmp.le.s32.totalorder 1, %s20
      %p192 = scmp.lt.s32.totalorder %s20, 3
      %p193 = pnand %p191, %p192
      %p194 = pneg %p193
      // Predicated region
      $region25: #{tpu_custom_call.1} parent=5 // pred_check
        _
      $region26: #{tpu_custom_call.1} parent=5 // pred_check_branch
        %196 = sbr.rel (%p193) target = $region28
      $region27: #{tpu_custom_call.1} parent=5 // pred_region
        %s197 = ssub.s32 %s20, 1
        // Predicated region
        $region29: #{tpu_custom_call.1} parent=27 // pred_check
          %p198 = pneg %p53
        $region30: #{tpu_custom_call.1} parent=27 // pred_check_branch
          %200 = sbr.rel (%p198) target = $region32
        $region31: #{tpu_custom_call.1} parent=27 // pred_region
          %201 = dma.done [#allocation3], 256
        $region32: #{tpu_custom_call.1} parent=27 // pred_fallthru
          _
        %s202 = sand.u32 %s68, 1
        %s203 = scalar_lea.sflag [#allocation6], %s202
        %s204 = sand.u32 %s68, 1
        %s205 = smul.addr %s204, 16
        %s206 = scalar_lea.vmem [#allocation5], %s205
        // Predicated region
        $region33: #{tpu_custom_call.1} parent=27 // pred_check
          %p207 = pneg %p81
        $region34: #{tpu_custom_call.1} parent=27 // pred_check_branch
          %209 = sbr.rel (%p207) target = $region36
        $region35: #{tpu_custom_call.1} parent=27 // pred_region
          %210 = dma.done %s203, 256
        $region36: #{tpu_custom_call.1} parent=27 // pred_fallthru
          _
        %p211 = pneg %p53
        %p212 = pneg %p50
        %s213 = sand.u32 %s68, 1
        %s214 = scalar_lea.sflag [#allocation6], %s213
        %s215 = sand.u32 %s68, 1
        %s216 = smul.addr %s215, 16
        %s217 = scalar_lea.vmem [#allocation5], %s216
        %p218 = pneg %p81
        %p219 = pneg %p78
        %p220 = pneg %p109
        %p221 = pneg %p106
        %s222 = sand.u32 %s96, 1
        %s223 = scalar_lea.sflag [#allocation4], %s222
        %s224 = sand.u32 %s96, 1
        %s225 = smul.addr %s224, 16
        %s226 = scalar_lea.vmem [#allocation7], %s225
        %p227 = pneg %p137
        %p228 = pneg %p134
        %s229 = sand.u32 %s124, 1
        %s230 = scalar_lea.sflag [#allocation9], %s229
        %s231 = sand.u32 %s124, 1
        %s232 = smul.addr %s231, 16
        %s233 = scalar_lea.vmem [#allocation8], %s232
        %v234 = vld [vmem:[#allocation2] sm:$0xff]
        %v235 = vld [vmem:[#allocation2 + $0x8] sm:$0xff]
        %v236 = vld [vmem:[%s206] sm:$0xff]
        %v237 = vld [vmem:[%s206 + $0x8] sm:$0xff]
        %vm238 = vcmask 130048
        %v240 = vsel %vm238, %v234, 0
        %v243 = vsel %vm238, %v235, 0
        %245 = vmatprep.subr.mxu0 0.0
        %246 = vmatpush1.msra.mxu0 %v236
        %247 = vmatprep.subr.mxu0 0.0
        %248 = vmatpush1.msra.mxu0 %v237
        %249 = vmatprep.subr.mxu0 0.0
        %250 = vmatpush1.msra.mxu0 0.0
        %251 = vmatprep.subr.mxu0 0.0
        %252 = vmatpush1.msra.mxu0 0.0
        %253 = vmatprep.subr.mxu0 0.0
        %254 = vmatpush1.msra.mxu0 0.0
        %255 = vmatprep.subr.mxu0 0.0
        %256 = vmatpush1.msra.mxu0 0.0
        %257 = vmatprep.subr.mxu0 0.0
        %258 = vmatpush1.msra.mxu0 0.0
        %259 = vmatprep.subr.mxu0 0.0
        %260 = vmatpush1.msra.mxu0 0.0
        %261 = vmatprep.subr.mxu0 0.0
        %262 = vmatpush1.msra.mxu0 0.0
        %263 = vmatprep.subr.mxu0 0.0
        %264 = vmatpush1.msra.mxu0 0.0
        %265 = vmatprep.subr.mxu0 0.0
        %266 = vmatpush1.msra.mxu0 0.0
        %267 = vmatprep.subr.mxu0 0.0
        %268 = vmatpush1.msra.mxu0 0.0
        %269 = vmatprep.subr.mxu0 0.0
        %270 = vmatpush1.msra.mxu0 0.0
        %271 = vmatprep.subr.mxu0 0.0
        %272 = vmatpush1.msra.mxu0 0.0
        %273 = vmatprep.subr.mxu0 0.0
        %274 = vmatpush1.msra.mxu0 0.0
        %275 = vmatprep.subr.mxu0 0.0
        %276 = vmatpush1.msra.mxu0 0.0
        %277 = vmatprep.subr.mxu0 0.0
        %278 = vmatpush1.msra.mxu0 0.0
        %279 = vmatprep.subr.mxu0 0.0
        %280 = vmatpush1.msra.mxu0 0.0
        %281 = vmatprep.subr.mxu0 0.0
        %282 = vmatpush1.msra.mxu0 0.0
        %283 = vmatprep.subr.mxu0 0.0
        %284 = vmatpush1.msra.mxu0 0.0
        %285 = vmatprep.subr.mxu0 0.0
        %286 = vmatpush1.msra.mxu0 0.0
        %287 = vmatprep.subr.mxu0 0.0
        %288 = vmatpush1.msra.mxu0 0.0
        %289 = vmatprep.subr.mxu0 0.0
        %290 = vmatpush1.msra.mxu0 0.0
        %291 = vmatprep.subr.mxu0 0.0
        %292 = vmatpush1.msra.mxu0 0.0
        %293 = vmatprep.subr.mxu0 0.0
        %294 = vmatpush1.msra.mxu0 0.0
        %295 = vmatprep.subr.mxu0 0.0
        %296 = vmatpush1.msra.mxu0 0.0
        %297 = vmatprep.subr.mxu0 0.0
        %298 = vmatpush1.msra.mxu0 0.0
        %299 = vmatprep.subr.mxu0 0.0
        %300 = vmatpush1.msra.mxu0 0.0
        %301 = vmatprep.subr.mxu0 0.0
        %302 = vmatpush1.msra.mxu0 0.0
        %303 = vmatprep.subr.mxu0 0.0
        %304 = vmatpush1.msra.mxu0 0.0
        %305 = vmatprep.subr.mxu0 0.0
        %306 = vmatpush1.msra.mxu0 0.0
        %307 = vmatprep.subr.mxu0 0.0
        %308 = vmatpush1.msra.mxu0 0.0
        %309 = vmatprep.mubr.f32.mxu0 0.0
        %310 = vmatmul.mubr.f32.gmra.mrb[0].mxu0 %v240
        %v311 = vpop.f32.mrb[0].mxu0
        %v312 = vadd.f32 0.0, %v311
        %v313 = vpop.f32.mrb[0].mxu0
        %314 = vmatprep.mubr.f32.mxu0 0.0
        %315 = vmatmul.mubr.f32.gmra.mrb[0].mxu0 %v243
        %v316 = vpop.f32.mrb[0].mxu0
        %v317 = vadd.f32 0.0, %v316
        %v318 = vpop.f32.mrb[0].mxu0
        %319 = vdwg.mxu0
        %vm320 = vcmask 261120
        %321 = vst.msk [vmem:[%s233] sm:$0xff] %vm320, %v312
        %322 = vst.msk [vmem:[%s233 + $0x8] sm:$0xff] %vm320, %v317
        %v323 = vsub.f32 %v236, %v312
        %v324 = vsub.f32 %v237, %v317
        %325 = vst.msk [vmem:[%s226] sm:$0xff] %vm320, %v323
        %326 = vst.msk [vmem:[%s226 + $0x8] sm:$0xff] %vm320, %v324
        %s327 = sand.u32 %s96, 1
        %s328 = scalar_lea.sflag [#allocation4], %s327
        %s329 = sand.u32 %s96, 1
        %s330 = smul.addr %s329, 16
        %s331 = scalar_lea.vmem [#allocation7], %s330
        %s332 = sand.u32 %s124, 1
        %s333 = scalar_lea.sflag [#allocation9], %s332
        %s334 = sand.u32 %s124, 1
        %s335 = smul.addr %s334, 16
        %s336 = scalar_lea.vmem [#allocation8], %s335
        // Predicated region
        $region37: #{tpu_custom_call.1} parent=27 // pred_check
          %p337 = pneg %p106
        $region38: #{tpu_custom_call.1} parent=27 // pred_check_branch
          %339 = sbr.rel (%p337) target = $region40
        $region39: #{tpu_custom_call.1} parent=27 // pred_region
          %s341 = ssub.s32 256, 256
          %342 = vsyncadd %s328, %s341
          %s343 = smul.addr %s29, 2
          %s344 = sadd.s32 %s30, %s343
          %s345 = smul.addr %s344, 128
          %s346 = scalar_lea.hbm %s2, %s345
          %s347 = sshll.u32 %s331, 4
          %s348 = int_to_ptr.vmem [resolvable:$true] %s347
          %353 = dma.vmem_to_hbm [thread:$0]  %s348, 256, %s346, %s328, 128, 128, 8
        $region40: #{tpu_custom_call.1} parent=27 // pred_fallthru
          _
        // Predicated region
        $region41: #{tpu_custom_call.1} parent=27 // pred_check
          %p354 = pneg %p134
        $region42: #{tpu_custom_call.1} parent=27 // pred_check_branch
          %356 = sbr.rel (%p354) target = $region44
        $region43: #{tpu_custom_call.1} parent=27 // pred_region
          %s358 = ssub.s32 256, 256
          %359 = vsyncadd %s333, %s358
          %s360 = smul.addr %s29, 2
          %s361 = sadd.s32 %s30, %s360
          %s362 = smul.addr %s361, 128
          %s363 = scalar_lea.hbm %s3, %s362
          %s364 = sshll.u32 %s336, 4
          %s365 = int_to_ptr.vmem [resolvable:$true] %s364
          %370 = dma.vmem_to_hbm [thread:$0]  %s365, 256, %s363, %s333, 128, 128, 8
        $region44: #{tpu_custom_call.1} parent=27 // pred_fallthru
          _
      $region28: #{tpu_custom_call.1} parent=5 // pred_fallthru
        _
      %p371 = scmp.le.s32.totalorder 2, %s20
      // Predicated region
      $region45: #{tpu_custom_call.1} parent=5 // pred_check
        %p372 = pneg %p371
      $region46: #{tpu_custom_call.1} parent=5 // pred_check_branch
        %374 = sbr.rel (%p372) target = $region48
      $region47: #{tpu_custom_call.1} parent=5 // pred_region
        %s375 = ssub.s32 %s20, 2
        // Predicated region
        $region49: #{tpu_custom_call.1} parent=47 // pred_check
          %p376 = pneg %p112
        $region50: #{tpu_custom_call.1} parent=47 // pred_check_branch
          %378 = sbr.rel (%p376) target = $region52
        $region51: #{tpu_custom_call.1} parent=47 // pred_region
          %s379 = sand.u32 %s97, 1
          %s380 = scalar_lea.sflag [#allocation4], %s379
          %s381 = sand.u32 %s97, 1
          %s382 = smul.addr %s381, 16
          %s383 = scalar_lea.vmem [#allocation7], %s382
          %384 = dma.done %s380, 256
        $region52: #{tpu_custom_call.1} parent=47 // pred_fallthru
          _
        // Predicated region
        $region53: #{tpu_custom_call.1} parent=47 // pred_check
          %p385 = pneg %p140
        $region54: #{tpu_custom_call.1} parent=47 // pred_check_branch
          %387 = sbr.rel (%p385) target = $region56
        $region55: #{tpu_custom_call.1} parent=47 // pred_region
          %s388 = sand.u32 %s125, 1
          %s389 = scalar_lea.sflag [#allocation9], %s388
          %s390 = sand.u32 %s125, 1
          %s391 = smul.addr %s390, 16
          %s392 = scalar_lea.vmem [#allocation8], %s391
          %393 = dma.done %s389, 256
        $region56: #{tpu_custom_call.1} parent=47 // pred_fallthru
          _
      $region48: #{tpu_custom_call.1} parent=5 // pred_fallthru
        _
    $region6: #{tpu_custom_call.1} parent=1 // loop_footer
      %s24 = sadd.s32 1, %s20
    $region7: #{tpu_custom_call.1} parent=1 // loop_footer_branch
      %19 = sbr.rel target = $region3
    $region8: #{tpu_custom_call.1} parent=1 // loop_exit
      _
    %394 = vsyncpa [#allocation3], 1
    %s395 = scalar_lea.sflag [#allocation3], 1
    %396 = vsyncpa %s395, 1
    %397 = vsyncpa [#allocation6], 1
    %s398 = scalar_lea.sflag [#allocation6], 1
    %399 = vsyncpa %s398, 1
    %400 = vsyncpa [#allocation4], 1
    %s401 = scalar_lea.sflag [#allocation4], 1
    %402 = vsyncpa %s401, 1
    %403 = vsyncpa [#allocation9], 1
    %s404 = scalar_lea.sflag [#allocation9], 1
    %405 = vsyncpa %s404, 1

</llo_original>
